<compile_context>
chip_gen: v6e
topology: v6e:2x2x1
jax: 0.10.0
libtpu: 0.0.40
codegen_flags: <defaults>
</compile_context>

<pallas_src>
import functools

import jax
import jax.numpy as jnp
import numpy as np
from jax.experimental import pallas as pl
from jax.experimental.pallas import tpu as pltpu

_LANE = 128   # lanes per vreg row
_SUB = 8      # f32 sublanes per vreg


def _round_up(n, m):
    return ((n + m - 1) // m) * m


def _lane_pad(n):
    # VMEM footprint accounting: minor dims are padded to 128 lanes.
    return _round_up(max(int(n), 1), _LANE)


def _vmem_capacity_bytes():
    try:
        cap = getattr(pltpu.get_tpu_info(), "vmem_capacity_bytes", None)
        if cap:
            return int(cap)
    except Exception:
        pass
    return 64 * 1024 * 1024   # conservative fallback (v7x-sized)


def _mlp_kernel(x_ref, w1_ref, b1_ref, w2_ref, b2_ref, w3_ref, b3_ref, o_ref,
                *, l3_matmul):
    # x arrives as raw f32 rows straight from HBM; cast the MXU *operands* to
    # bf16 in VMEM (no extra HBM traffic), accumulate in f32 on the MXU.
    x = x_ref[...].astype(jnp.bfloat16)                              # (T, F)
    h1 = jnp.dot(x, w1_ref[...], preferred_element_type=jnp.float32)
    h1 = jnp.maximum(h1 + b1_ref[...], 0.0)                          # (T, G*32)
    h2 = jnp.dot(h1.astype(jnp.bfloat16), w2_ref[...],
                 preferred_element_type=jnp.float32)
    h2 = jnp.maximum(h2 + b2_ref[...], 0.0)                          # (T, G*8)
    if l3_matmul:
        # Packed layout: one tiny block-diagonal (G*8, G) matmul.  The
        # segmented lane-reduce it replaces is not free; this MXU pass is.
        out = jnp.dot(h2.astype(jnp.bfloat16), w3_ref[...],
                      preferred_element_type=jnp.float32) + b3_ref[...]
    else:
        # Generic layout: 8 -> 1 head as VPU broadcast-multiply + lane reduce
        # (keeps the MXU out of an 8-MAC/lane contraction, per review).
        out = jnp.sum(h2 * w3_ref[...], axis=-1, keepdims=True) + b3_ref[...]
    o_ref[...] = out.astype(o_ref.dtype)


def avocado_forward(x, params, *, tile_rows=None):
    """Forward pass of AvocadoRegressor.

    x: (B, D) float32.  params in PyTorch (out, in) layout:
       w1 (32, D), b1 (32, 1), w2 (8, 32), b2 (8, 1), w3 (1, 8), b3 (1, 1).
    Returns (B, 1) float32.
    """
    B, D = x.shape
    H1 = params["w1"].shape[0]
    H2 = params["w2"].shape[0]
    O = params["w3"].shape[0]          # == 1 for this module
    assert params["w1"].shape[1] == D

    # ---- weights / biases in "x @ W" orientation (tiny, VMEM resident) ------
    w1t = jnp.asarray(params["w1"], jnp.float32).T            # (D,  H1)
    w2t = jnp.asarray(params["w2"], jnp.float32).T            # (H1, H2)
    w3c = jnp.asarray(params["w3"], jnp.float32).T            # (H2, O)
    b1r = jnp.asarray(params["b1"], jnp.float32).reshape(1, H1)
    b2r = jnp.asarray(params["b2"], jnp.float32).reshape(1, H2)
    b3r = jnp.asarray(params["b3"], jnp.float32).reshape(1, O)

    # ---- lane packing: G batch rows per 128-lane row via a free reshape -----
    G = 1
    if D <= _LANE and _LANE % D == 0:
        g = _LANE // D
        if g <= 16 and B % g == 0:     # g<=16 keeps the block-diag weights tiny
            G = g

    if G > 1:
        eye = jnp.eye(G, dtype=jnp.float32)
        w1k = jnp.kron(eye, w1t).astype(jnp.bfloat16)          # (G*D,  G*H1)
        w2k = jnp.kron(eye, w2t).astype(jnp.bfloat16)          # (G*H1, G*H2)
        w3k = jnp.kron(eye, w3c).astype(jnp.bfloat16)          # (G*H2, G*O)
        b1k = jnp.tile(b1r, (1, G))
        b2k = jnp.tile(b2r, (1, G))
        b3k = jnp.tile(b3r, (1, G))
        x_in = x.reshape(B // G, G * D)   # row-major -> pure bitcast, no copy
    else:
        w1k = w1t.astype(jnp.bfloat16)
        w2k = w2t.astype(jnp.bfloat16)
        w3k = jnp.asarray(params["w3"], jnp.float32).reshape(1, H2)  # VPU path
        b1k, b2k, b3k = b1r, b2r, b3r
        x_in = x

    rows, feat = x_in.shape
    out_cols = G * O

    # ---- VMEM-derived batch tile (generation aware) -------------------------
    # Per-row footprint (bytes) counting 128-lane padding of every minor dim:
    # f32 input block (double-buffered) + f32 h1/h2 temporaries + their bf16
    # copies fed to the MXU + f32 output block (double-buffered).
    lp_f = _lane_pad(feat)
    lp_1 = _lane_pad(w1k.shape[-1])
    lp_2 = _lane_pad(w2k.shape[-1])
    lp_o = _lane_pad(out_cols)
    per_row = 4 * (2 * lp_f + lp_1 + lp_2 + 2 * lp_o) + 2 * (lp_f + lp_1 + lp_2)

    weights = (w1k, b1k, w2k, b2k, w3k, b3k)
    weight_bytes = 2 * sum(int(w.size) * w.dtype.itemsize for w in weights)

    vmem_phys = _vmem_capacity_bytes()          # 128 MiB v5e/v6e, 64 MiB v7x
    vmem_budget = vmem_phys // 2                # headroom for Mosaic scratch
    usable = max(vmem_budget - weight_bytes - (2 << 20), per_row * _SUB)
    cap_rows = max(_SUB, (usable // per_row) // _SUB * _SUB)

    # >= ~1 MiB of x per step amortises the ~0.35 us/step pipeline overhead;
    # >= 8 steps (when the batch is big enough) keeps the double-buffer busy
    # and gives each v7x TensorCore several tiles under "parallel" semantics.
    target_rows = _round_up(max((1 << 20) // (feat * 4), 1), _SUB)
    min_steps = 8
    rows_for_steps = _round_up(pl.cdiv(rows, min_steps), _SUB)
    tile = min(cap_rows, max(target_rows, rows_for_steps))
    if tile_rows is not None:
        tile = _round_up(max(int(tile_rows), 1), _SUB)
    tile = min(tile, _round_up(rows, _SUB))
    if tile >= rows:
        tile, nb = rows, 1          # single full-extent block (always legal)
    else:
        nb = pl.cdiv(rows, tile)    # ragged last block instead of jnp.pad

    def full(a):
        return pl.BlockSpec(a.shape, lambda i: (0, 0))

    cost = pl.CostEstimate(
        flops=2 * B * (D * H1 + H1 * H2 + H2 * O),
        transcendentals=0,
        bytes_accessed=int(x.size) * 4 + B * O * 4 + weight_bytes // 2,
    )

    out = pl.pallas_call(
        functools.partial(_mlp_kernel, l3_matmul=(G > 1)),
        out_shape=jax.ShapeDtypeStruct((rows, out_cols), jnp.float32),
        grid=(nb,),
        in_specs=[
            # x tile; default double-buffering (sweep pl.Buffered(3) only if a
            # profile shows exposed DMA).
            pl.BlockSpec((tile, feat), lambda i: (i, 0)),
            full(w1k), full(b1k), full(w2k), full(b2k), full(w3k), full(b3k),
        ],
        out_specs=pl.BlockSpec((tile, out_cols), lambda i: (i, 0)),
        compiler_params=pltpu.CompilerParams(
            dimension_semantics=("parallel",),   # batch tiles are independent
            vmem_limit_bytes=int(min(vmem_phys * 3 // 4, 128 * 1024 * 1024)),
        ),
        cost_estimate=cost,
    )(x_in, w1k, b1k, w2k, b2k, w3k, b3k)

    return out.reshape(B, O)        # free reshape, undoes the lane packing


# ---------------------------------------------------------------------------
# Parameter init matching the PyTorch module (xavier_uniform_ weights,
# nn.Linear default bias init), stored in PyTorch (out, in) layout.
# ---------------------------------------------------------------------------
def xavier_uniform(key, fan_out, fan_in):
    bound = float(np.sqrt(6.0 / (fan_in + fan_out)))
    return jax.random.uniform(key, (fan_out, fan_in), jnp.float32, -bound, bound)


def linear_bias(key, fan_out, fan_in):
    bound = float(1.0 / np.sqrt(fan_in))
    return jax.random.uniform(key, (fan_out, 1), jnp.float32, -bound, bound)


def init_params(key, input_dim):
    k1, k2, k3, k4, k5, k6 = jax.random.split(key, 6)
    return {
        "w1": xavier_uniform(k1, 32, input_dim), "b1": linear_bias(k2, 32, input_dim),
        "w2": xavier_uniform(k3, 8, 32),          "b2": linear_bias(k4, 8, 32),
        "w3": xavier_uniform(k5, 1, 8),           "b3": linear_bias(k6, 1, 8),
    }


def reference_forward(x, p):
    h1 = jnp.maximum(x @ p["w1"].T + p["b1"].reshape(1, -1), 0.0)
    h2 = jnp.maximum(h1 @ p["w2"].T + p["b2"].reshape(1, -1), 0.0)
    return h2 @ p["w3"].T + p["b3"].reshape(1, -1)


if __name__ == "__main__":
    root = jax.random.PRNGKey(0)

    # (input_dim, batch, tile_rows override)
    configs = [
        (16, 8,    None),   # packed fast path (G=8), single full-extent block
        (16, 1024, 32),     # packed fast path, 4-step grid (exercises pipelining)
        (13, 1000, 192),    # generic path (G=1), ragged last block (no jnp.pad)
    ]
    for idx, (D, B, tr) in enumerate(configs):
        kp, kx = jax.random.split(jax.random.fold_in(root, idx))
        params = init_params(kp, D)
        x = jax.random.normal(kx, (B, D), jnp.float32)

        fwd = jax.jit(functools.partial(avocado_forward, tile_rows=tr))
        out = jax.block_until_ready(fwd(x, params))
        assert out.shape == (B, 1)

        ref = reference_forward(x, params)
        # bf16 matmul operands + f32 accumulation => a few 1e-3 absolute error
        # on O(1) outputs; 5e-2 is a loose structural-correctness bound.
        np.testing.assert_allclose(np.asarray(out), np.asarray(ref),
                                   rtol=5e-2, atol=5e-2)

    print("KERNEL_OK")
</pallas_src>

<mosaic_0001>
module attributes {stable_mosaic.version = 11 : i64} {
  func.func @_mlp_kernel(%arg0: i32, %arg1: memref<1x128xf32, #tpu.memory_space<vmem>>, %arg2: memref<128x256xbf16, #tpu.memory_space<vmem>>, %arg3: memref<1x256xf32, #tpu.memory_space<vmem>>, %arg4: memref<256x64xbf16, #tpu.memory_space<vmem>>, %arg5: memref<1x64xf32, #tpu.memory_space<vmem>>, %arg6: memref<64x8xbf16, #tpu.memory_space<vmem>>, %arg7: memref<1x8xf32, #tpu.memory_space<vmem>>, %arg8: memref<1x8xf32, #tpu.memory_space<vmem>>) attributes {dimension_semantics = [#tpu.dimension_semantics<parallel>], iteration_bounds = array<i64: 1>, scalar_prefetch = 0 : i64, scratch_operands = 0 : i64, tpu.core_type = #tpu.core_type<tc>, window_params = [{transform_indices = @transform_0, window_bounds = array<i64: 1, 128>}, {pipeline_mode = #tpu.pipeline_mode<synchronous>, transform_indices = @transform_1, window_bounds = array<i64: 128, 256>}, {pipeline_mode = #tpu.pipeline_mode<synchronous>, transform_indices = @transform_2, window_bounds = array<i64: 1, 256>}, {pipeline_mode = #tpu.pipeline_mode<synchronous>, transform_indices = @transform_3, window_bounds = array<i64: 256, 64>}, {pipeline_mode = #tpu.pipeline_mode<synchronous>, transform_indices = @transform_4, window_bounds = array<i64: 1, 64>}, {pipeline_mode = #tpu.pipeline_mode<synchronous>, transform_indices = @transform_5, window_bounds = array<i64: 64, 8>}, {pipeline_mode = #tpu.pipeline_mode<synchronous>, transform_indices = @transform_6, window_bounds = array<i64: 1, 8>}, {transform_indices = @transform_7, window_bounds = array<i64: 1, 8>}]} {
    %c0 = arith.constant 0 : index
    %c0_0 = arith.constant 0 : index
    %0 = vector.load %arg1[%c0, %c0_0] : memref<1x128xf32, #tpu.memory_space<vmem>>, vector<1x128xf32>
    %1 = arith.truncf %0 : vector<1x128xf32> to vector<1x128xbf16>
    %c0_1 = arith.constant 0 : index
    %c0_2 = arith.constant 0 : index
    %2 = vector.load %arg2[%c0_1, %c0_2] : memref<128x256xbf16, #tpu.memory_space<vmem>>, vector<128x256xbf16>
    %cst = arith.constant dense<0.000000e+00> : vector<1x256xf32>
    %3 = tpu.matmul %1, %2, %cst {dimension_numbers = #tpu.dot_dimension_numbers<[1], [0], [0], [1], [0, 0, 1, 1], [], []>} : vector<1x128xbf16>, vector<128x256xbf16>, vector<1x256xf32> -> vector<1x256xf32>
    %c0_3 = arith.constant 0 : index
    %c0_4 = arith.constant 0 : index
    %4 = vector.load %arg3[%c0_3, %c0_4] : memref<1x256xf32, #tpu.memory_space<vmem>>, vector<1x256xf32>
    %5 = arith.addf %3, %4 : vector<1x256xf32>
    %cst_5 = arith.constant 0.000000e+00 : f32
    %6 = vector.broadcast %cst_5 : f32 to vector<1x256xf32>
    %7 = arith.maximumf %5, %6 : vector<1x256xf32>
    %8 = arith.truncf %7 : vector<1x256xf32> to vector<1x256xbf16>
    %c0_6 = arith.constant 0 : index
    %c0_7 = arith.constant 0 : index
    %9 = vector.load %arg4[%c0_6, %c0_7] : memref<256x64xbf16, #tpu.memory_space<vmem>>, vector<256x64xbf16>
    %cst_8 = arith.constant dense<0.000000e+00> : vector<1x64xf32>
    %10 = tpu.matmul %8, %9, %cst_8 {dimension_numbers = #tpu.dot_dimension_numbers<[1], [0], [0], [1], [0, 0, 1, 1], [], []>} : vector<1x256xbf16>, vector<256x64xbf16>, vector<1x64xf32> -> vector<1x64xf32>
    %c0_9 = arith.constant 0 : index
    %c0_10 = arith.constant 0 : index
    %11 = vector.load %arg5[%c0_9, %c0_10] : memref<1x64xf32, #tpu.memory_space<vmem>>, vector<1x64xf32>
    %12 = arith.addf %10, %11 : vector<1x64xf32>
    %cst_11 = arith.constant 0.000000e+00 : f32
    %13 = vector.broadcast %cst_11 : f32 to vector<1x64xf32>
    %14 = arith.maximumf %12, %13 : vector<1x64xf32>
    %15 = arith.truncf %14 : vector<1x64xf32> to vector<1x64xbf16>
    %c0_12 = arith.constant 0 : index
    %c0_13 = arith.constant 0 : index
    %16 = vector.load %arg6[%c0_12, %c0_13] : memref<64x8xbf16, #tpu.memory_space<vmem>>, vector<64x8xbf16>
    %cst_14 = arith.constant dense<0.000000e+00> : vector<1x8xf32>
    %17 = tpu.matmul %15, %16, %cst_14 {dimension_numbers = #tpu.dot_dimension_numbers<[1], [0], [0], [1], [0, 0, 1, 1], [], []>} : vector<1x64xbf16>, vector<64x8xbf16>, vector<1x8xf32> -> vector<1x8xf32>
    %c0_15 = arith.constant 0 : index
    %c0_16 = arith.constant 0 : index
    %18 = vector.load %arg7[%c0_15, %c0_16] : memref<1x8xf32, #tpu.memory_space<vmem>>, vector<1x8xf32>
    %19 = arith.addf %17, %18 : vector<1x8xf32>
    %c0_17 = arith.constant 0 : index
    %c0_18 = arith.constant 0 : index
    %20 = vector.load %arg8[%c0_17, %c0_18] : memref<1x8xf32, #tpu.memory_space<vmem>>, vector<1x8xf32>
    tpu.vector_store %arg8[%c0_17, %c0_18], %19 {strides = array<i32>} : memref<1x8xf32, #tpu.memory_space<vmem>>, vector<1x8xf32>,
    return
  }
  func.func @transform_0(%arg0: i32) -> (i32, i32) {
    %c0_i32 = arith.constant 0 : i32
    %c0_i32_0 = arith.constant 0 : i32
    return %arg0, %c0_i32 : i32, i32
  }
  func.func @transform_1(%arg0: i32) -> (i32, i32) {
    %c0_i32 = arith.constant 0 : i32
    %c0_i32_0 = arith.constant 0 : i32
    %c0_i32_1 = arith.constant 0 : i32
    return %c0_i32, %c0_i32_0 : i32, i32
  }
  func.func @transform_2(%arg0: i32) -> (i32, i32) {
    %c0_i32 = arith.constant 0 : i32
    %c0_i32_0 = arith.constant 0 : i32
    %c0_i32_1 = arith.constant 0 : i32
    return %c0_i32, %c0_i32_0 : i32, i32
  }
  func.func @transform_3(%arg0: i32) -> (i32, i32) {
    %c0_i32 = arith.constant 0 : i32
    %c0_i32_0 = arith.constant 0 : i32
    %c0_i32_1 = arith.constant 0 : i32
    return %c0_i32, %c0_i32_0 : i32, i32
  }
  func.func @transform_4(%arg0: i32) -> (i32, i32) {
    %c0_i32 = arith.constant 0 : i32
    %c0_i32_0 = arith.constant 0 : i32
    %c0_i32_1 = arith.constant 0 : i32
    return %c0_i32, %c0_i32_0 : i32, i32
  }
  func.func @transform_5(%arg0: i32) -> (i32, i32) {
    %c0_i32 = arith.constant 0 : i32
    %c0_i32_0 = arith.constant 0 : i32
    %c0_i32_1 = arith.constant 0 : i32
    return %c0_i32, %c0_i32_0 : i32, i32
  }
  func.func @transform_6(%arg0: i32) -> (i32, i32) {
    %c0_i32 = arith.constant 0 : i32
    %c0_i32_0 = arith.constant 0 : i32
    %c0_i32_1 = arith.constant 0 : i32
    return %c0_i32, %c0_i32_0 : i32, i32
  }
  func.func @transform_7(%arg0: i32) -> (i32, i32) {
    %c0_i32 = arith.constant 0 : i32
    %c0_i32_0 = arith.constant 0 : i32
    return %arg0, %c0_i32 : i32, i32
  }
}

</mosaic_0001>

<llo_original>
// kernel: avocado_forward.1
$region0: #{avocado_forward.1}
  #allocation0 [shape = 'u32[]', space=smem, size = 0x4, offset = 0x4, fixed_abs, tag = 'smem constant byte address 0x4 - core index']
  #allocation1 [shape = 'u32[144,128]{1,0:T(1,128)}', space=vmem, size = 0x12000, scoped, tag = 'internal scratch']
  %s0 = inlined_call_operand.vmem [shape: f32[1,128], index: 0, kind: input, shape index: {}]
  %s1 = inlined_call_operand.vmem [shape: bf16[128,256], index: 1, kind: input, shape index: {}]
  %s2 = inlined_call_operand.vmem [shape: f32[1,256], index: 2, kind: input, shape index: {}]
  %s3 = inlined_call_operand.vmem [shape: bf16[256,64], index: 3, kind: input, shape index: {}]
  %s4 = inlined_call_operand.vmem [shape: f32[1,64], index: 4, kind: input, shape index: {}]
  %s5 = inlined_call_operand.vmem [shape: bf16[64,8], index: 5, kind: input, shape index: {}]
  %s6 = inlined_call_operand.vmem [shape: f32[1,8], index: 6, kind: input, shape index: {}]
  %s7 = inlined_call_operand.hbm [shape: f32[1,8], index: 7, kind: output, shape index: {}]
  %s8 = sld [smem:[#allocation0]]
  $region38: #{avocado_forward.1} parent=0
    _
  %s10 = ssub.s32 1, %s8
  %s11 = scalar_select 0, %s10, %s8
  $region1: #{avocado_forward.1} parent=0
    #allocation2 [shape = 'u8[512]{0}', space=vmem, size = 0x400, scoped, tag = 'output window, operand 0, single buffered']
    #allocation3 [shape = 's32[1]{0}', space=sflag, size = 0x4, scoped, tag = 'scoped memory for avocado_forward.1']
    %12 = vsyncpa [#allocation3], 0
    // Predicated region
    $region2: #{avocado_forward.1} parent=1 // pred_check
      _
    $region3: #{avocado_forward.1} parent=1 // pred_check_branch
      %14 = sbr.rel (0) target = $region5
    $region4: #{avocado_forward.1} parent=1 // pred_region
      _
    $region5: #{avocado_forward.1} parent=1 // pred_fallthru
      _
    // Predicated region
    $region6: #{avocado_forward.1} parent=1 // pred_check
      _
    $region7: #{avocado_forward.1} parent=1 // pred_check_branch
      %16 = sbr.rel (0) target = $region9
    $region8: #{avocado_forward.1} parent=1 // pred_region
      _
    $region9: #{avocado_forward.1} parent=1 // pred_fallthru
      _
    // Predicated region
    $region10: #{avocado_forward.1} parent=1 // pred_check
      _
    $region11: #{avocado_forward.1} parent=1 // pred_check_branch
      %18 = sbr.rel (0) target = $region13
    $region12: #{avocado_forward.1} parent=1 // pred_region
      _
    $region13: #{avocado_forward.1} parent=1 // pred_fallthru
      _
    // Predicated region
    $region14: #{avocado_forward.1} parent=1 // pred_check
      _
    $region15: #{avocado_forward.1} parent=1 // pred_check_branch
      %20 = sbr.rel (0) target = $region17
    $region16: #{avocado_forward.1} parent=1 // pred_region
      _
    $region17: #{avocado_forward.1} parent=1 // pred_fallthru
      _
    // Predicated region
    $region18: #{avocado_forward.1} parent=1 // pred_check
      _
    $region19: #{avocado_forward.1} parent=1 // pred_check_branch
      %22 = sbr.rel (0) target = $region21
    $region20: #{avocado_forward.1} parent=1 // pred_region
      _
    $region21: #{avocado_forward.1} parent=1 // pred_fallthru
      _
    // Predicated region
    $region22: #{avocado_forward.1} parent=1 // pred_check
      _
    $region23: #{avocado_forward.1} parent=1 // pred_check_branch
      %24 = sbr.rel (0) target = $region25
    $region24: #{avocado_forward.1} parent=1 // pred_region
      _
    $region25: #{avocado_forward.1} parent=1 // pred_fallthru
      _
    // Predicated region
    $region26: #{avocado_forward.1} parent=1 // pred_check
      _
    $region27: #{avocado_forward.1} parent=1 // pred_check_branch
      %26 = sbr.rel (0) target = $region29
    $region28: #{avocado_forward.1} parent=1 // pred_region
      _
    $region29: #{avocado_forward.1} parent=1 // pred_fallthru
      _
    %v28 = vld [vmem:[%s0] sm:$0x1]
    %v29 = vpack.c.bf16 %v28, %v28
    %v30 = vld [vmem:[%s1] sm:$0xff]
    %v31 = vld [vmem:[%s1 + $0x8] sm:$0xff]
    %v32 = vld [vmem:[%s1 + $0x10] sm:$0xff]
    %v33 = vld [vmem:[%s1 + $0x18] sm:$0xff]
    %v34 = vld [vmem:[%s1 + $0x20] sm:$0xff]
    %v35 = vld [vmem:[%s1 + $0x28] sm:$0xff]
    %v36 = vld [vmem:[%s1 + $0x30] sm:$0xff]
    %v37 = vld [vmem:[%s1 + $0x38] sm:$0xff]
    %v38 = vld [vmem:[%s1 + $0x40] sm:$0xff]
    %v39 = vld [vmem:[%s1 + $0x48] sm:$0xff]
    %v40 = vld [vmem:[%s1 + $0x50] sm:$0xff]
    %v41 = vld [vmem:[%s1 + $0x58] sm:$0xff]
    %v42 = vld [vmem:[%s1 + $0x60] sm:$0xff]
    %v43 = vld [vmem:[%s1 + $0x68] sm:$0xff]
    %v44 = vld [vmem:[%s1 + $0x70] sm:$0xff]
    %v45 = vld [vmem:[%s1 + $0x78] sm:$0xff]
    %v46 = vld [vmem:[%s2] sm:$0x3]
    %v63 = vunpack.c.l.b16 %v30
    %v64 = vunpack.c.h.b16 %v30
    %v65 = vunpack.c.l.b16 %v31
    %v66 = vunpack.c.h.b16 %v31
    %v67 = vunpack.c.l.b16 %v32
    %v68 = vunpack.c.h.b16 %v32
    %v69 = vunpack.c.l.b16 %v33
    %v70 = vunpack.c.h.b16 %v33
    %v71 = vunpack.c.l.b16 %v34
    %v72 = vunpack.c.h.b16 %v34
    %v73 = vunpack.c.l.b16 %v35
    %v74 = vunpack.c.h.b16 %v35
    %v75 = vunpack.c.l.b16 %v36
    %v76 = vunpack.c.h.b16 %v36
    %v77 = vunpack.c.l.b16 %v37
    %v78 = vunpack.c.h.b16 %v37
    %v79 = vunpack.c.l.b16 %v38
    %v80 = vunpack.c.h.b16 %v38
    %v81 = vunpack.c.l.b16 %v39
    %v82 = vunpack.c.h.b16 %v39
    %v83 = vunpack.c.l.b16 %v40
    %v84 = vunpack.c.h.b16 %v40
    %v85 = vunpack.c.l.b16 %v41
    %v86 = vunpack.c.h.b16 %v41
    %v87 = vunpack.c.l.b16 %v42
    %v88 = vunpack.c.h.b16 %v42
    %v89 = vunpack.c.l.b16 %v43
    %v90 = vunpack.c.h.b16 %v43
    %v91 = vunpack.c.l.b16 %v44
    %v92 = vunpack.c.h.b16 %v44
    %v93 = vunpack.c.l.b16 %v45
    %v94 = vunpack.c.h.b16 %v45
    %v95 = vpack.c.b16 %v65, %v63
    %v96 = vpack.c.b16 %v66, %v64
    %v97 = vpack.c.b16 %v69, %v67
    %v98 = vpack.c.b16 %v70, %v68
    %v99 = vpack.c.b16 %v73, %v71
    %v100 = vpack.c.b16 %v74, %v72
    %v101 = vpack.c.b16 %v77, %v75
    %v102 = vpack.c.b16 %v78, %v76
    %v103 = vpack.c.b16 %v81, %v79
    %v104 = vpack.c.b16 %v82, %v80
    %v105 = vpack.c.b16 %v85, %v83
    %v106 = vpack.c.b16 %v86, %v84
    %v107 = vpack.c.b16 %v89, %v87
    %v108 = vpack.c.b16 %v90, %v88
    %v109 = vpack.c.b16 %v93, %v91
    %v110 = vpack.c.b16 %v94, %v92
    %v128 = vlaneseq
    %v129 = vshrl.u32 %v128, 7
    %v130 = vsub.s32 0, %v129
    %v131 = vrot.slane %v46, %v130
    %v132 = vlaneseq
    %v133 = vshrl.u32 %v132, 7
    %v134 = vsub.s32 1, %v133
    %v135 = vrot.slane %v46, %v134
    %138 = vmatprep.subr.bf16.mxu0 %v110
    %139 = vmatpush1.bf16.msra.mxu0 %v109
    %140 = vmatprep.subr.bf16.mxu0 %v108
    %141 = vmatpush1.bf16.msra.mxu0 %v107
    %142 = vmatprep.subr.bf16.mxu0 %v106
    %143 = vmatpush1.bf16.msra.mxu0 %v105
    %144 = vmatprep.subr.bf16.mxu0 %v104
    %145 = vmatpush1.bf16.msra.mxu0 %v103
    %146 = vmatprep.subr.bf16.mxu0 %v102
    %147 = vmatpush1.bf16.msra.mxu0 %v101
    %148 = vmatprep.subr.bf16.mxu0 %v100
    %149 = vmatpush1.bf16.msra.mxu0 %v99
    %150 = vmatprep.subr.bf16.mxu0 %v98
    %151 = vmatpush1.bf16.msra.mxu0 %v97
    %152 = vmatprep.subr.bf16.mxu0 %v96
    %153 = vmatpush1.bf16.msra.mxu0 %v95
    %154 = vmatprep.subr.bf16.mxu0 0
    %155 = vmatpush2.bf16.msra.mxu0 0
    %156 = vmatprep.subr.bf16.mxu0 0
    %157 = vmatpush2.bf16.msra.mxu0 0
    %158 = vmatprep.subr.bf16.mxu0 0
    %159 = vmatpush2.bf16.msra.mxu0 0
    %160 = vmatprep.subr.bf16.mxu0 0
    %161 = vmatpush2.bf16.msra.mxu0 0
    %162 = vmatprep.subr.bf16.mxu0 0
    %163 = vmatpush2.bf16.msra.mxu0 0
    %164 = vmatprep.subr.bf16.mxu0 0
    %165 = vmatpush2.bf16.msra.mxu0 0
    %166 = vmatprep.subr.bf16.mxu0 0
    %167 = vmatpush2.bf16.msra.mxu0 0
    %168 = vmatprep.subr.bf16.mxu0 0
    %169 = vmatpush2.bf16.msra.mxu0 0
    %170 = vmatprep.mubr.bf16.mxu0 0
    %171 = vmatmul.mubr.bf16.gmra.mxu0 %v29
    %v172 = vpop.f32.mrf.mxu0
    %v173 = vadd.f32 %v131, %v172
    %v174 = vpop.f32.mrf.mxu0
    %v175 = vadd.f32 %v135, %v174
    %v176 = vpop.f32.mrf.mxu0
    %v177 = vpop.f32.mrf.mxu0
    %178 = vdwg.mxu0
    %v179 = vmax.f32 %v173, 0.0
    %v180 = vmax.f32 %v175, 0.0
    %v181 = vpack.c.bf16 %v179, %v179
    %v182 = vpack.c.bf16 %v180, %v180
    %v183 = vld [vmem:[%s3] sm:$0xf]
    %v184 = vld [vmem:[%s3 + $0x4] sm:$0xf]
    %v185 = vld [vmem:[%s3 + $0x8] sm:$0xf]
    %v186 = vld [vmem:[%s3 + $0xc] sm:$0xf]
    %v187 = vld [vmem:[%s3 + $0x10] sm:$0xf]
    %v188 = vld [vmem:[%s3 + $0x14] sm:$0xf]
    %v189 = vld [vmem:[%s3 + $0x18] sm:$0xf]
    %v190 = vld [vmem:[%s3 + $0x1c] sm:$0xf]
    %v191 = vld [vmem:[%s3 + $0x20] sm:$0xf]
    %v192 = vld [vmem:[%s3 + $0x24] sm:$0xf]
    %v193 = vld [vmem:[%s3 + $0x28] sm:$0xf]
    %v194 = vld [vmem:[%s3 + $0x2c] sm:$0xf]
    %v195 = vld [vmem:[%s3 + $0x30] sm:$0xf]
    %v196 = vld [vmem:[%s3 + $0x34] sm:$0xf]
    %v197 = vld [vmem:[%s3 + $0x38] sm:$0xf]
    %v198 = vld [vmem:[%s3 + $0x3c] sm:$0xf]
    %v199 = vld [vmem:[%s3 + $0x40] sm:$0xf]
    %v200 = vld [vmem:[%s3 + $0x44] sm:$0xf]
    %v201 = vld [vmem:[%s3 + $0x48] sm:$0xf]
    %v202 = vld [vmem:[%s3 + $0x4c] sm:$0xf]
    %v203 = vld [vmem:[%s3 + $0x50] sm:$0xf]
    %v204 = vld [vmem:[%s3 + $0x54] sm:$0xf]
    %v205 = vld [vmem:[%s3 + $0x58] sm:$0xf]
    %v206 = vld [vmem:[%s3 + $0x5c] sm:$0xf]
    %v207 = vld [vmem:[%s3 + $0x60] sm:$0xf]
    %v208 = vld [vmem:[%s3 + $0x64] sm:$0xf]
    %v209 = vld [vmem:[%s3 + $0x68] sm:$0xf]
    %v210 = vld [vmem:[%s3 + $0x6c] sm:$0xf]
    %v211 = vld [vmem:[%s3 + $0x70] sm:$0xf]
    %v212 = vld [vmem:[%s3 + $0x74] sm:$0xf]
    %v213 = vld [vmem:[%s3 + $0x78] sm:$0xf]
    %v214 = vld [vmem:[%s3 + $0x7c] sm:$0xf]
    %v215 = vld [vmem:[%s4] sm:$0x1]
    %v248 = vunpack.c.l.b16 %v183
    %v249 = vunpack.c.l.b16 %v184
    %v250 = vunpack.c.l.b16 %v185
    %v251 = vunpack.c.l.b16 %v186
    %v252 = vunpack.c.l.b16 %v187
    %v253 = vunpack.c.l.b16 %v188
    %v254 = vunpack.c.l.b16 %v189
    %v255 = vunpack.c.l.b16 %v190
    %v256 = vunpack.c.l.b16 %v191
    %v257 = vunpack.c.l.b16 %v192
    %v258 = vunpack.c.l.b16 %v193
    %v259 = vunpack.c.l.b16 %v194
    %v260 = vunpack.c.l.b16 %v195
    %v261 = vunpack.c.l.b16 %v196
    %v262 = vunpack.c.l.b16 %v197
    %v263 = vunpack.c.l.b16 %v198
    %v264 = vunpack.c.l.b16 %v199
    %v265 = vunpack.c.l.b16 %v200
    %v266 = vunpack.c.l.b16 %v201
    %v267 = vunpack.c.l.b16 %v202
    %v268 = vunpack.c.l.b16 %v203
    %v269 = vunpack.c.l.b16 %v204
    %v270 = vunpack.c.l.b16 %v205
    %v271 = vunpack.c.l.b16 %v206
    %v272 = vunpack.c.l.b16 %v207
    %v273 = vunpack.c.l.b16 %v208
    %v274 = vunpack.c.l.b16 %v209
    %v275 = vunpack.c.l.b16 %v210
    %v276 = vunpack.c.l.b16 %v211
    %v277 = vunpack.c.l.b16 %v212
    %v278 = vunpack.c.l.b16 %v213
    %v279 = vunpack.c.l.b16 %v214
    %v280 = vpack.c.b16 %v249, %v248
    %v281 = vpack.c.b16 %v251, %v250
    %v282 = vpack.c.b16 %v253, %v252
    %v283 = vpack.c.b16 %v255, %v254
    %v284 = vpack.c.b16 %v257, %v256
    %v285 = vpack.c.b16 %v259, %v258
    %v286 = vpack.c.b16 %v261, %v260
    %v287 = vpack.c.b16 %v263, %v262
    %v288 = vpack.c.b16 %v265, %v264
    %v289 = vpack.c.b16 %v267, %v266
    %v290 = vpack.c.b16 %v269, %v268
    %v291 = vpack.c.b16 %v271, %v270
    %v292 = vpack.c.b16 %v273, %v272
    %v293 = vpack.c.b16 %v275, %v274
    %v294 = vpack.c.b16 %v277, %v276
    %v295 = vpack.c.b16 %v279, %v278
    %312 = vmatprep.subr.bf16.mxu0 0
    %313 = vmatpush1.bf16.msra.mxu0 %v287
    %314 = vmatprep.subr.bf16.mxu0 0
    %315 = vmatpush1.bf16.msra.mxu0 %v286
    %316 = vmatprep.subr.bf16.mxu0 0
    %317 = vmatpush1.bf16.msra.mxu0 %v285
    %318 = vmatprep.subr.bf16.mxu0 0
    %319 = vmatpush1.bf16.msra.mxu0 %v284
    %320 = vmatprep.subr.bf16.mxu0 0
    %321 = vmatpush1.bf16.msra.mxu0 %v283
    %322 = vmatprep.subr.bf16.mxu0 0
    %323 = vmatpush1.bf16.msra.mxu0 %v282
    %324 = vmatprep.subr.bf16.mxu0 0
    %325 = vmatpush1.bf16.msra.mxu0 %v281
    %326 = vmatprep.subr.bf16.mxu0 0
    %327 = vmatpush1.bf16.msra.mxu0 %v280
    %328 = vmatprep.subr.bf16.mxu0 0
    %329 = vmatpush2.bf16.msra.mxu0 %v295
    %330 = vmatprep.subr.bf16.mxu0 0
    %331 = vmatpush2.bf16.msra.mxu0 %v294
    %332 = vmatprep.subr.bf16.mxu0 0
    %333 = vmatpush2.bf16.msra.mxu0 %v293
    %334 = vmatprep.subr.bf16.mxu0 0
    %335 = vmatpush2.bf16.msra.mxu0 %v292
    %336 = vmatprep.subr.bf16.mxu0 0
    %337 = vmatpush2.bf16.msra.mxu0 %v291
    %338 = vmatprep.subr.bf16.mxu0 0
    %339 = vmatpush2.bf16.msra.mxu0 %v290
    %340 = vmatprep.subr.bf16.mxu0 0
    %341 = vmatpush2.bf16.msra.mxu0 %v289
    %342 = vmatprep.subr.bf16.mxu0 0
    %343 = vmatpush2.bf16.msra.mxu0 %v288
    %344 = vmatprep.mubr.bf16.mxu0 %v182
    %345 = vmatmul.mubr.bf16.gmra.mxu0 %v181
    %v346 = vpop.f32.mrf.mxu0
    %v347 = vadd.f32 %v215, %v346
    %v348 = vpop.f32.mrf.mxu0
    %v349 = vpop.f32.mrf.mxu0
    %v350 = vpop.f32.mrf.mxu0
    %351 = vdwg.mxu0
    %v352 = vmax.f32 %v347, 0.0
    %v353 = vpack.c.bf16 %v352, %v352
    %v354 = vld [vmem:[%s5] sm:$0xf]
    %v355 = vld [vmem:[%s5 + $0x4] sm:$0xf]
    %v356 = vld [vmem:[%s5 + $0x8] sm:$0xf]
    %v357 = vld [vmem:[%s5 + $0xc] sm:$0xf]
    %v358 = vld [vmem:[%s5 + $0x10] sm:$0xf]
    %v359 = vld [vmem:[%s5 + $0x14] sm:$0xf]
    %v360 = vld [vmem:[%s5 + $0x18] sm:$0xf]
    %v361 = vld [vmem:[%s5 + $0x1c] sm:$0xf]
    %v362 = vld [vmem:[%s6] sm:$0x1]
    %v371 = vunpack.c.l.b16 %v354
    %v372 = vunpack.c.l.b16 %v355
    %v373 = vunpack.c.l.b16 %v356
    %v374 = vunpack.c.l.b16 %v357
    %v375 = vunpack.c.l.b16 %v358
    %v376 = vunpack.c.l.b16 %v359
    %v377 = vunpack.c.l.b16 %v360
    %v378 = vunpack.c.l.b16 %v361
    %v379 = vpack.c.b16 %v372, %v371
    %v380 = vpack.c.b16 %v374, %v373
    %v381 = vpack.c.b16 %v376, %v375
    %v382 = vpack.c.b16 %v378, %v377
    %vm387 = vcmask 523264
    %v389 = vsel %vm387, %v353, 0
    %391 = vmatprep.subr.bf16.mxu0 0
    %392 = vmatpush1.bf16.msra.mxu0 0
    %393 = vmatprep.subr.bf16.mxu0 0
    %394 = vmatpush1.bf16.msra.mxu0 0
    %395 = vmatprep.subr.bf16.mxu0 0
    %396 = vmatpush1.bf16.msra.mxu0 0
    %397 = vmatprep.subr.bf16.mxu0 0
    %398 = vmatpush1.bf16.msra.mxu0 0
    %399 = vmatprep.subr.bf16.mxu0 0
    %400 = vmatpush1.bf16.msra.mxu0 %v382
    %401 = vmatprep.subr.bf16.mxu0 0
    %402 = vmatpush1.bf16.msra.mxu0 %v381
    %403 = vmatprep.subr.bf16.mxu0 0
    %404 = vmatpush1.bf16.msra.mxu0 %v380
    %405 = vmatprep.subr.bf16.mxu0 0
    %406 = vmatpush1.bf16.msra.mxu0 %v379
    %407 = vmatprep.subr.bf16.mxu0 0
    %408 = vmatpush2.bf16.msra.mxu0 0
    %409 = vmatprep.subr.bf16.mxu0 0
    %410 = vmatpush2.bf16.msra.mxu0 0
    %411 = vmatprep.subr.bf16.mxu0 0
    %412 = vmatpush2.bf16.msra.mxu0 0
    %413 = vmatprep.subr.bf16.mxu0 0
    %414 = vmatpush2.bf16.msra.mxu0 0
    %415 = vmatprep.subr.bf16.mxu0 0
    %416 = vmatpush2.bf16.msra.mxu0 0
    %417 = vmatprep.subr.bf16.mxu0 0
    %418 = vmatpush2.bf16.msra.mxu0 0
    %419 = vmatprep.subr.bf16.mxu0 0
    %420 = vmatpush2.bf16.msra.mxu0 0
    %421 = vmatprep.subr.bf16.mxu0 0
    %422 = vmatpush2.bf16.msra.mxu0 0
    %423 = vmatprep.mubr.bf16.mxu0 0
    %424 = vmatmul.mubr.bf16.gmra.mxu0 %v389
    %v425 = vpop.f32.mrf.mxu0
    %v426 = vadd.f32 %v362, %v425
    %v427 = vpop.f32.mrf.mxu0
    %v428 = vpop.f32.mrf.mxu0
    %v429 = vpop.f32.mrf.mxu0
    %430 = vdwg.mxu0
    %vm431 = vcmask 57344
    %432 = vst.msk [vmem:[#allocation2] sm:$0x1] %vm431, %v426
    // Predicated region
    $region30: #{avocado_forward.1} parent=1 // pred_check
      _
    $region31: #{avocado_forward.1} parent=1 // pred_check_branch
      %434 = sbr.rel (0) target = $region33
    $region32: #{avocado_forward.1} parent=1 // pred_region
      %s436 = ssub.s32 16, 16
      %437 = vsyncadd [#allocation3], %s436
      %s439 = sshll.u32 [#allocation2], 4
      %s440 = int_to_ptr.vmem [resolvable:$true] %s439
      %442 = dma.vmem_to_hbm [thread:$0]  %s440, 16, %s7, [#allocation3]
    $region33: #{avocado_forward.1} parent=1 // pred_fallthru
      _
    // Predicated region
    $region34: #{avocado_forward.1} parent=1 // pred_check
      _
    $region35: #{avocado_forward.1} parent=1 // pred_check_branch
      %444 = sbr.rel (0) target = $region37
    $region36: #{avocado_forward.1} parent=1 // pred_region
      %445 = dma.done [#allocation3], 16
    $region37: #{avocado_forward.1} parent=1 // pred_fallthru
      _
    %446 = vsyncpa [#allocation3], 1

</llo_original>
